<compile_context>
chip_gen: v7x
topology: tpu7x:2x2x1
jax: 0.10.0
libtpu: 0.0.40
codegen_flags: <defaults>
</compile_context>

<pallas_src>
import jax
import jax.numpy as jnp
from jax.experimental import pallas as pl
from jax.experimental.pallas import tpu as pltpu

_MIB = 1024 * 1024


def _round_up(x, m):
    return ((x + m - 1) // m) * m


def _cdiv(a, b):
    return (a + b - 1) // b


def _vmem_capacity_bytes():
    try:
        return int(pltpu.get_tpu_info().vmem_capacity_bytes)
    except Exception:
        return 64 * _MIB  # conservative (v7x per-TC) fallback


def _make_kernel(Hp, Ap):
    def kernel(obs_ref, w0_ref, w1_ref, w2_ref, bias_ref, mu_ref):
        x = obs_ref[...]  # (Bt, node_fdim) f32

        # Static, 128-aligned slices of the packed f32 bias row.
        b0 = bias_ref[:, 0:Hp]
        b1 = bias_ref[:, Hp:2 * Hp]
        b2 = bias_ref[:, 2 * Hp:2 * Hp + Ap]

        bf16 = jnp.bfloat16
        # Layer 0: bf16 MXU operands, f32 accumulate; bias-add / ReLU in f32.
        h = jnp.dot(x.astype(bf16), w0_ref[...],
                    preferred_element_type=jnp.float32) + b0
        h = jnp.maximum(h, 0.0)

        # Layer 1
        h = jnp.dot(h.astype(bf16), w1_ref[...],
                    preferred_element_type=jnp.float32) + b1
        h = jnp.maximum(h, 0.0)

        # Output layer -> mu (lane-dense, padded to Ap columns)
        mu = jnp.dot(h.astype(bf16), w2_ref[...],
                     preferred_element_type=jnp.float32) + b2
        mu_ref[...] = mu.astype(mu_ref.dtype)

    return kernel


def _per_step_vmem_bytes(Bt, K, Hp, Ap, single_buffer_weights):
    # bf16 weights + f32 packed bias (resident; single- or double-buffered).
    weights = (K * Hp + Hp * Hp + Hp * Ap) * 2 + (2 * Hp + Ap) * 4
    if not single_buffer_weights:
        weights *= 2
    # double-buffered obs input tile + mu output tile (f32).
    io = 2 * (Bt * K + Bt * Ap) * 4
    # live f32 hidden activations + matmul accumulator scratch.
    act = (2 * Bt * Hp + Bt * max(Hp, Ap)) * 4
    return weights + io + act


def prepare_params(params):
    """One-time parameter preparation (pad / cast / pack). Cache the result and
    reuse it across forward calls; rebuild only when params change."""
    w0, b0, w1, b1, w2, b2, log_std = params
    node_fdim, hidden_dim = w0.shape
    action_dim = w2.shape[1]

    Hp = _round_up(hidden_dim, 128)
    Ap = _round_up(action_dim, 128)

    f32, bf16 = jnp.float32, jnp.bfloat16
    # Zero padding is exact: zero w columns + zero bias -> ReLU(0)=0 -> zero w rows.
    w0_p = jnp.pad(w0.astype(f32), ((0, 0), (0, Hp - hidden_dim))).astype(bf16)
    w1_p = jnp.pad(w1.astype(f32), ((0, Hp - hidden_dim), (0, Hp - hidden_dim))).astype(bf16)
    w2_p = jnp.pad(w2.astype(f32), ((0, Hp - hidden_dim), (0, Ap - action_dim))).astype(bf16)
    b0_p = jnp.pad(b0.reshape(1, -1).astype(f32), ((0, 0), (0, Hp - hidden_dim)))
    b1_p = jnp.pad(b1.reshape(1, -1).astype(f32), ((0, 0), (0, Hp - hidden_dim)))
    b2_p = jnp.pad(b2.reshape(1, -1).astype(f32), ((0, 0), (0, Ap - action_dim)))
    bias = jnp.concatenate([b0_p, b1_p, b2_p], axis=1)  # (1, 2*Hp + Ap), f32

    return dict(
        w0=w0_p, w1=w1_p, w2=w2_p, bias=bias,
        log_std=jnp.asarray(log_std, f32),
        node_fdim=node_fdim, hidden_dim=hidden_dim, action_dim=action_dim,
        Hp=Hp, Ap=Ap,
    )


def continuous_frag_head_forward(obs, prepared, log_std_bounds, *, batch_tile=1024):
    """Returns (mu, std):  mu (B, action_dim) f32,  std (action_dim,) f32."""
    B, K_in = obs.shape
    K = prepared["node_fdim"]
    H = prepared["hidden_dim"]
    A = prepared["action_dim"]
    Hp, Ap = prepared["Hp"], prepared["Ap"]
    assert K_in == K

    # --- std: tiny, batch-independent -> plain JAX (not in the kernel).
    log_std_min, log_std_max = log_std_bounds
    ls = jnp.tanh(prepared["log_std"].reshape(-1).astype(jnp.float32))
    ls = log_std_min + 0.5 * (log_std_max - log_std_min) * (ls + 1.0)
    std = jnp.exp(ls)  # (action_dim,)

    # --- generation-aware VMEM budget.
    cap = _vmem_capacity_bytes()
    if cap <= 80 * _MIB:           # v7x: 64 MiB VMEM per TensorCore
        per_step_cap, vmem_limit_cap = 24 * _MIB, 40 * _MIB
    else:                          # v5e / v6e: 128 MiB
        per_step_cap, vmem_limit_cap = 56 * _MIB, 100 * _MIB

    single_buf = hasattr(pl, "Buffered")

    # --- tile selection: large Bt for HBM-roofline efficiency, >=2 grid steps when
    # the batch allows (so v7x's two TensorCores both get work), batch padded only
    # to a small multiple of the sublane.
    Bp8 = _round_up(max(B, 1), 8)
    Bt = min(_round_up(batch_tile, 8), Bp8)
    while Bt > 8 and _per_step_vmem_bytes(Bt, K, Hp, Ap, single_buf) > per_step_cap:
        Bt = max(8, (Bt // 2 // 8) * 8)
    g = max(1, _cdiv(Bp8, Bt))
    if Bp8 >= 16:
        g = max(g, 2)
    Bt = _round_up(_cdiv(Bp8, g), 8)
    Bp = Bt * g

    obs_f = obs if obs.dtype == jnp.float32 else obs.astype(jnp.float32)
    obs_p = obs_f if Bp == B else jnp.pad(obs_f, ((0, Bp - B), (0, 0)))

    vmem_need = _per_step_vmem_bytes(Bt, K, Hp, Ap, single_buf)
    vmem_limit = int(min(vmem_limit_cap, max(32 * _MIB, 2 * vmem_need)))

    flops = 2 * B * (K * H + H * H + H * A)
    bytes_accessed = (4 * Bp * K                      # obs (f32)
                      + 2 * (K * Hp + Hp * Hp + Hp * Ap)  # bf16 weights
                      + 4 * (2 * Hp + Ap)             # packed bias (f32)
                      + 4 * Bp * Ap)                  # mu writeback (f32)

    kernel = _make_kernel(Hp, Ap)

    def run(use_single_buffer):
        rep = lambda i: (0, 0)  # replicated (weights / bias) blocks
        if use_single_buffer:
            wspec = lambda shape: pl.BlockSpec(shape, rep, pipeline_mode=pl.Buffered(1))
        else:
            wspec = lambda shape: pl.BlockSpec(shape, rep)
        return pl.pallas_call(
            kernel,
            out_shape=jax.ShapeDtypeStruct((Bp, Ap), jnp.float32),
            grid_spec=pltpu.PrefetchScalarGridSpec(
                num_scalar_prefetch=0,
                grid=(g,),
                in_specs=[
                    pl.BlockSpec((Bt, K), lambda i: (i, 0)),  # obs tile (K unpadded)
                    wspec((K, Hp)),                           # w0 (bf16)
                    wspec((Hp, Hp)),                          # w1 (bf16)
                    wspec((Hp, Ap)),                          # w2 (bf16)
                    wspec((1, 2 * Hp + Ap)),                  # packed biases (f32)
                ],
                out_specs=pl.BlockSpec((Bt, Ap), lambda i: (i, 0)),  # lane-dense mu
            ),
            compiler_params=pltpu.CompilerParams(
                dimension_semantics=("parallel",),
                vmem_limit_bytes=vmem_limit,
            ),
            cost_estimate=pl.CostEstimate(
                flops=flops, transcendentals=0, bytes_accessed=bytes_accessed),
        )(obs_p, prepared["w0"], prepared["w1"], prepared["w2"], prepared["bias"])

    if single_buf:
        try:
            mu_p = run(True)
        except Exception:  # fall back to default double buffering if Buffered(1) rejected
            mu_p = run(False)
    else:
        mu_p = run(False)

    mu = mu_p[:B, :A]
    return mu, std


def init_params(key, node_fdim, hidden_dim, action_dim, log_std_init=-1.0):
    ks = jax.random.split(key, 6)
    scale = 0.1
    w0 = scale * jax.random.normal(ks[0], (node_fdim, hidden_dim), jnp.float32)
    b0 = scale * jax.random.normal(ks[1], (1, hidden_dim), jnp.float32)
    w1 = scale * jax.random.normal(ks[2], (hidden_dim, hidden_dim), jnp.float32)
    b1 = scale * jax.random.normal(ks[3], (1, hidden_dim), jnp.float32)
    w2 = scale * jax.random.normal(ks[4], (hidden_dim, action_dim), jnp.float32)
    b2 = scale * jax.random.normal(ks[5], (1, action_dim), jnp.float32)
    log_std = jnp.full((1, action_dim), log_std_init, jnp.float32)
    return (w0, b0, w1, b1, w2, b2, log_std)


def reference_forward(obs, params, log_std_bounds):
    w0, b0, w1, b1, w2, b2, log_std = params
    h = jnp.maximum(obs @ w0 + b0, 0.0)
    h = jnp.maximum(h @ w1 + b1, 0.0)
    mu = h @ w2 + b2
    lo, hi = log_std_bounds
    ls = jnp.tanh(log_std)
    ls = lo + 0.5 * (hi - lo) * (ls + 1.0)
    return mu, jnp.exp(ls)[0]


if __name__ == "__main__":
    key = jax.random.PRNGKey(0)
    k_obs, k_par = jax.random.split(key)

    # Small shapes: batch=16, node_fdim=32, hidden_dim=32, hidden_depth=2, action_dim=8
    B, node_fdim, hidden_dim, action_dim = 16, 32, 32, 8
    log_std_bounds = (-5.0, 2.0)

    obs = jax.random.normal(k_obs, (B, node_fdim), jnp.float32)
    params = init_params(k_par, node_fdim, hidden_dim, action_dim, log_std_init=-1.0)

    # One-time parameter preparation (padding / bf16 cast / bias packing), cached.
    prepared = prepare_params(params)

    mu, std = continuous_frag_head_forward(obs, prepared, log_std_bounds)
    jax.block_until_ready((mu, std))

    mu_ref, std_ref = reference_forward(obs, params, log_std_bounds)
    assert mu.shape == (B, action_dim) and std.shape == (action_dim,)
    # bf16 matmul operands (f32 accumulation) -> loosened tolerance vs f32 reference.
    assert jnp.allclose(mu, mu_ref, atol=3e-2, rtol=3e-2), float(jnp.max(jnp.abs(mu - mu_ref)))
    assert jnp.allclose(std, std_ref, atol=1e-6, rtol=1e-6)

    # TODO(synk): torch.distributions.Normal object itself has no Pallas equivalent;
    # the kernel returns its sufficient parameters (mu, std).
    print("KERNEL_OK")
</pallas_src>

<mosaic_0001>
module attributes {stable_mosaic.version = 11 : i64} {
  func.func @kernel(%arg0: i32, %arg1: memref<8x32xf32, #tpu.memory_space<vmem>>, %arg2: memref<32x128xbf16, #tpu.memory_space<vmem>>, %arg3: memref<128x128xbf16, #tpu.memory_space<vmem>>, %arg4: memref<128x128xbf16, #tpu.memory_space<vmem>>, %arg5: memref<1x384xf32, #tpu.memory_space<vmem>>, %arg6: memref<8x128xf32, #tpu.memory_space<vmem>>) attributes {dimension_semantics = [#tpu.dimension_semantics<parallel>], iteration_bounds = array<i64: 2>, scalar_prefetch = 0 : i64, scratch_operands = 0 : i64, tpu.core_type = #tpu.core_type<tc>, window_params = [{transform_indices = @transform_0, window_bounds = array<i64: 8, 32>}, {pipeline_mode = #tpu.pipeline_mode<synchronous>, transform_indices = @transform_1, window_bounds = array<i64: 32, 128>}, {pipeline_mode = #tpu.pipeline_mode<synchronous>, transform_indices = @transform_2, window_bounds = array<i64: 128, 128>}, {pipeline_mode = #tpu.pipeline_mode<synchronous>, transform_indices = @transform_3, window_bounds = array<i64: 128, 128>}, {pipeline_mode = #tpu.pipeline_mode<synchronous>, transform_indices = @transform_4, window_bounds = array<i64: 1, 384>}, {transform_indices = @transform_5, window_bounds = array<i64: 8, 128>}]} {
    %c0 = arith.constant 0 : index
    %c0_0 = arith.constant 0 : index
    %0 = vector.load %arg1[%c0, %c0_0] : memref<8x32xf32, #tpu.memory_space<vmem>>, vector<8x32xf32>
    %c0_1 = arith.constant 0 : index
    %c0_2 = arith.constant 0 : index
    %1 = vector.load %arg5[%c0_1, %c0_2] : memref<1x384xf32, #tpu.memory_space<vmem>>, vector<1x128xf32>
    %c0_3 = arith.constant 0 : index
    %c128 = arith.constant 128 : index
    %2 = vector.load %arg5[%c0_3, %c128] : memref<1x384xf32, #tpu.memory_space<vmem>>, vector<1x128xf32>
    %c0_4 = arith.constant 0 : index
    %c256 = arith.constant 256 : index
    %3 = vector.load %arg5[%c0_4, %c256] : memref<1x384xf32, #tpu.memory_space<vmem>>, vector<1x128xf32>
    %4 = arith.truncf %0 : vector<8x32xf32> to vector<8x32xbf16>
    %c0_5 = arith.constant 0 : index
    %c0_6 = arith.constant 0 : index
    %5 = vector.load %arg2[%c0_5, %c0_6] : memref<32x128xbf16, #tpu.memory_space<vmem>>, vector<32x128xbf16>
    %cst = arith.constant dense<0.000000e+00> : vector<8x128xf32>
    %6 = tpu.matmul %4, %5, %cst {dimension_numbers = #tpu.dot_dimension_numbers<[1], [0], [0], [1], [0, 0, 1, 1], [], []>} : vector<8x32xbf16>, vector<32x128xbf16>, vector<8x128xf32> -> vector<8x128xf32>
    %7 = vector.broadcast %1 : vector<1x128xf32> to vector<8x128xf32>
    %8 = arith.addf %6, %7 : vector<8x128xf32>
    %cst_7 = arith.constant 0.000000e+00 : f32
    %9 = vector.broadcast %cst_7 : f32 to vector<8x128xf32>
    %10 = arith.maximumf %8, %9 : vector<8x128xf32>
    %11 = arith.truncf %10 : vector<8x128xf32> to vector<8x128xbf16>
    %c0_8 = arith.constant 0 : index
    %c0_9 = arith.constant 0 : index
    %12 = vector.load %arg3[%c0_8, %c0_9] : memref<128x128xbf16, #tpu.memory_space<vmem>>, vector<128x128xbf16>
    %cst_10 = arith.constant dense<0.000000e+00> : vector<8x128xf32>
    %13 = tpu.matmul %11, %12, %cst_10 {dimension_numbers = #tpu.dot_dimension_numbers<[1], [0], [0], [1], [0, 0, 1, 1], [], []>} : vector<8x128xbf16>, vector<128x128xbf16>, vector<8x128xf32> -> vector<8x128xf32>
    %14 = vector.broadcast %2 : vector<1x128xf32> to vector<8x128xf32>
    %15 = arith.addf %13, %14 : vector<8x128xf32>
    %cst_11 = arith.constant 0.000000e+00 : f32
    %16 = vector.broadcast %cst_11 : f32 to vector<8x128xf32>
    %17 = arith.maximumf %15, %16 : vector<8x128xf32>
    %18 = arith.truncf %17 : vector<8x128xf32> to vector<8x128xbf16>
    %c0_12 = arith.constant 0 : index
    %c0_13 = arith.constant 0 : index
    %19 = vector.load %arg4[%c0_12, %c0_13] : memref<128x128xbf16, #tpu.memory_space<vmem>>, vector<128x128xbf16>
    %cst_14 = arith.constant dense<0.000000e+00> : vector<8x128xf32>
    %20 = tpu.matmul %18, %19, %cst_14 {dimension_numbers = #tpu.dot_dimension_numbers<[1], [0], [0], [1], [0, 0, 1, 1], [], []>} : vector<8x128xbf16>, vector<128x128xbf16>, vector<8x128xf32> -> vector<8x128xf32>
    %21 = vector.broadcast %3 : vector<1x128xf32> to vector<8x128xf32>
    %22 = arith.addf %20, %21 : vector<8x128xf32>
    %c0_15 = arith.constant 0 : index
    %c0_16 = arith.constant 0 : index
    %23 = vector.load %arg6[%c0_15, %c0_16] : memref<8x128xf32, #tpu.memory_space<vmem>>, vector<8x128xf32>
    tpu.vector_store %arg6[%c0_15, %c0_16], %22 {strides = array<i32>} : memref<8x128xf32, #tpu.memory_space<vmem>>, vector<8x128xf32>,
    return
  }
  func.func @transform_0(%arg0: i32) -> (i32, i32) {
    %c0_i32 = arith.constant 0 : i32
    %c0_i32_0 = arith.constant 0 : i32
    return %arg0, %c0_i32 : i32, i32
  }
  func.func @transform_1(%arg0: i32) -> (i32, i32) {
    %c0_i32 = arith.constant 0 : i32
    %c0_i32_0 = arith.constant 0 : i32
    %c0_i32_1 = arith.constant 0 : i32
    return %c0_i32, %c0_i32_0 : i32, i32
  }
  func.func @transform_2(%arg0: i32) -> (i32, i32) {
    %c0_i32 = arith.constant 0 : i32
    %c0_i32_0 = arith.constant 0 : i32
    %c0_i32_1 = arith.constant 0 : i32
    return %c0_i32, %c0_i32_0 : i32, i32
  }
  func.func @transform_3(%arg0: i32) -> (i32, i32) {
    %c0_i32 = arith.constant 0 : i32
    %c0_i32_0 = arith.constant 0 : i32
    %c0_i32_1 = arith.constant 0 : i32
    return %c0_i32, %c0_i32_0 : i32, i32
  }
  func.func @transform_4(%arg0: i32) -> (i32, i32) {
    %c0_i32 = arith.constant 0 : i32
    %c0_i32_0 = arith.constant 0 : i32
    %c0_i32_1 = arith.constant 0 : i32
    return %c0_i32, %c0_i32_0 : i32, i32
  }
  func.func @transform_5(%arg0: i32) -> (i32, i32) {
    %c0_i32 = arith.constant 0 : i32
    %c0_i32_0 = arith.constant 0 : i32
    return %arg0, %c0_i32 : i32, i32
  }
}

module attributes {stable_mosaic.version = 11 : i64} {
  func.func @kernel(%arg0: i32, %arg1: memref<8x32xf32, #tpu.memory_space<vmem>>, %arg2: memref<32x128xbf16, #tpu.memory_space<vmem>>, %arg3: memref<128x128xbf16, #tpu.memory_space<vmem>>, %arg4: memref<128x128xbf16, #tpu.memory_space<vmem>>, %arg5: memref<1x384xf32, #tpu.memory_space<vmem>>, %arg6: memref<8x128xf32, #tpu.memory_space<vmem>>) attributes {dimension_semantics = [#tpu.dimension_semantics<parallel>], iteration_bounds = array<i64: 2>, scalar_prefetch = 0 : i64, scratch_operands = 0 : i64, tpu.core_type = #tpu.core_type<tc>, window_params = [{transform_indices = @transform_0, window_bounds = array<i64: 8, 32>}, {pipeline_mode = #tpu.pipeline_mode<synchronous>, transform_indices = @transform_1, window_bounds = array<i64: 32, 128>}, {pipeline_mode = #tpu.pipeline_mode<synchronous>, transform_indices = @transform_2, window_bounds = array<i64: 128, 128>}, {pipeline_mode = #tpu.pipeline_mode<synchronous>, transform_indices = @transform_3, window_bounds = array<i64: 128, 128>}, {pipeline_mode = #tpu.pipeline_mode<synchronous>, transform_indices = @transform_4, window_bounds = array<i64: 1, 384>}, {transform_indices = @transform_5, window_bounds = array<i64: 8, 128>}]} {
    %c0 = arith.constant 0 : index
    %c0_0 = arith.constant 0 : index
    %0 = vector.load %arg1[%c0, %c0_0] : memref<8x32xf32, #tpu.memory_space<vmem>>, vector<8x32xf32>
    %c0_1 = arith.constant 0 : index
    %c0_2 = arith.constant 0 : index
    %1 = vector.load %arg5[%c0_1, %c0_2] : memref<1x384xf32, #tpu.memory_space<vmem>>, vector<1x128xf32>
    %c0_3 = arith.constant 0 : index
    %c128 = arith.constant 128 : index
    %2 = vector.load %arg5[%c0_3, %c128] : memref<1x384xf32, #tpu.memory_space<vmem>>, vector<1x128xf32>
    %c0_4 = arith.constant 0 : index
    %c256 = arith.constant 256 : index
    %3 = vector.load %arg5[%c0_4, %c256] : memref<1x384xf32, #tpu.memory_space<vmem>>, vector<1x128xf32>
    %4 = arith.truncf %0 : vector<8x32xf32> to vector<8x32xbf16>
    %c0_5 = arith.constant 0 : index
    %c0_6 = arith.constant 0 : index
    %5 = vector.load %arg2[%c0_5, %c0_6] : memref<32x128xbf16, #tpu.memory_space<vmem>>, vector<32x128xbf16>
    %cst = arith.constant dense<0.000000e+00> : vector<8x128xf32>
    %6 = tpu.matmul %4, %5, %cst {dimension_numbers = #tpu.dot_dimension_numbers<[1], [0], [0], [1], [0, 0, 1, 1], [], []>} : vector<8x32xbf16>, vector<32x128xbf16>, vector<8x128xf32> -> vector<8x128xf32>
    %7 = vector.broadcast %1 : vector<1x128xf32> to vector<8x128xf32>
    %8 = arith.addf %6, %7 : vector<8x128xf32>
    %cst_7 = arith.constant 0.000000e+00 : f32
    %9 = vector.broadcast %cst_7 : f32 to vector<8x128xf32>
    %10 = arith.maximumf %8, %9 : vector<8x128xf32>
    %11 = arith.truncf %10 : vector<8x128xf32> to vector<8x128xbf16>
    %c0_8 = arith.constant 0 : index
    %c0_9 = arith.constant 0 : index
    %12 = vector.load %arg3[%c0_8, %c0_9] : memref<128x128xbf16, #tpu.memory_space<vmem>>, vector<128x128xbf16>
    %cst_10 = arith.constant dense<0.000000e+00> : vector<8x128xf32>
    %13 = tpu.matmul %11, %12, %cst_10 {dimension_numbers = #tpu.dot_dimension_numbers<[1], [0], [0], [1], [0, 0, 1, 1], [], []>} : vector<8x128xbf16>, vector<128x128xbf16>, vector<8x128xf32> -> vector<8x128xf32>
    %14 = vector.broadcast %2 : vector<1x128xf32> to vector<8x128xf32>
    %15 = arith.addf %13, %14 : vector<8x128xf32>
    %cst_11 = arith.constant 0.000000e+00 : f32
    %16 = vector.broadcast %cst_11 : f32 to vector<8x128xf32>
    %17 = arith.maximumf %15, %16 : vector<8x128xf32>
    %18 = arith.truncf %17 : vector<8x128xf32> to vector<8x128xbf16>
    %c0_12 = arith.constant 0 : index
    %c0_13 = arith.constant 0 : index
    %19 = vector.load %arg4[%c0_12, %c0_13] : memref<128x128xbf16, #tpu.memory_space<vmem>>, vector<128x128xbf16>
    %cst_14 = arith.constant dense<0.000000e+00> : vector<8x128xf32>
    %20 = tpu.matmul %18, %19, %cst_14 {dimension_numbers = #tpu.dot_dimension_numbers<[1], [0], [0], [1], [0, 0, 1, 1], [], []>} : vector<8x128xbf16>, vector<128x128xbf16>, vector<8x128xf32> -> vector<8x128xf32>
    %21 = vector.broadcast %3 : vector<1x128xf32> to vector<8x128xf32>
    %22 = arith.addf %20, %21 : vector<8x128xf32>
    %c0_15 = arith.constant 0 : index
    %c0_16 = arith.constant 0 : index
    %23 = vector.load %arg6[%c0_15, %c0_16] : memref<8x128xf32, #tpu.memory_space<vmem>>, vector<8x128xf32>
    tpu.vector_store %arg6[%c0_15, %c0_16], %22 {strides = array<i32>} : memref<8x128xf32, #tpu.memory_space<vmem>>, vector<8x128xf32>,
    return
  }
  func.func @transform_0(%arg0: i32) -> (i32, i32) {
    %c0_i32 = arith.constant 0 : i32
    %c0_i32_0 = arith.constant 0 : i32
    return %arg0, %c0_i32 : i32, i32
  }
  func.func @transform_1(%arg0: i32) -> (i32, i32) {
    %c0_i32 = arith.constant 0 : i32
    %c0_i32_0 = arith.constant 0 : i32
    %c0_i32_1 = arith.constant 0 : i32
    return %c0_i32, %c0_i32_0 : i32, i32
  }
  func.func @transform_2(%arg0: i32) -> (i32, i32) {
    %c0_i32 = arith.constant 0 : i32
    %c0_i32_0 = arith.constant 0 : i32
    %c0_i32_1 = arith.constant 0 : i32
    return %c0_i32, %c0_i32_0 : i32, i32
  }
  func.func @transform_3(%arg0: i32) -> (i32, i32) {
    %c0_i32 = arith.constant 0 : i32
    %c0_i32_0 = arith.constant 0 : i32
    %c0_i32_1 = arith.constant 0 : i32
    return %c0_i32, %c0_i32_0 : i32, i32
  }
  func.func @transform_4(%arg0: i32) -> (i32, i32) {
    %c0_i32 = arith.constant 0 : i32
    %c0_i32_0 = arith.constant 0 : i32
    %c0_i32_1 = arith.constant 0 : i32
    return %c0_i32, %c0_i32_0 : i32, i32
  }
  func.func @transform_5(%arg0: i32) -> (i32, i32) {
    %c0_i32 = arith.constant 0 : i32
    %c0_i32_0 = arith.constant 0 : i32
    return %arg0, %c0_i32 : i32, i32
  }
}

</mosaic_0001>

<llo_original>
// kernel: tpu_custom_call.1
$region0: #{tpu_custom_call.1}
  #allocation0 [shape = 'u32[]', space=smem, size = 0x4, offset = 0x4, fixed_abs, tag = 'smem constant byte address 0x4 - core index']
  #allocation1 [shape = 'u32[144,128]{1,0:T(1,128)}', space=vmem, size = 0x12000, scoped, tag = 'internal scratch']
  %s0 = inlined_call_operand.hbm [shape: f32[16,32], index: 0, kind: input, shape index: {}]
  %s1 = inlined_call_operand.hbm [shape: bf16[32,128], index: 1, kind: input, shape index: {}]
  %s2 = inlined_call_operand.hbm [shape: bf16[128,128], index: 2, kind: input, shape index: {}]
  %s3 = inlined_call_operand.hbm [shape: bf16[128,128], index: 3, kind: input, shape index: {}]
  %s4 = inlined_call_operand.vmem [shape: f32[1,384], index: 4, kind: input, shape index: {}]
  %s5 = inlined_call_operand.hbm [shape: f32[16,128], index: 5, kind: output, shape index: {}]
  %s6 = sld [smem:[#allocation0]]
  $region69: #{tpu_custom_call.1} parent=0
    _
  %s8 = ssub.s32 1, %s6
  %s9 = scalar_select 0, %s8, %s6
  $region1: #{tpu_custom_call.1} parent=0
    #allocation2 [shape = 'u8[8192]{0}', space=vmem, size = 0x2000, scoped, tag = 'input window, operand 0']
    #allocation3 [shape = 's32[2]{0}', space=sflag, size = 0x8, scoped, tag = 'scoped memory for tpu_custom_call.1']
    #allocation4 [shape = 's32[2]{0}', space=sflag, size = 0x8, scoped, tag = 'scoped memory for tpu_custom_call.1']
    #allocation5 [shape = 'u8[8192]{0}', space=vmem, size = 0x2000, scoped, tag = 'input window, operand 1, single buffered']
    #allocation6 [shape = 's32[1]{0}', space=sflag, size = 0x4, scoped, tag = 'scoped memory for tpu_custom_call.1']
    #allocation7 [shape = 'u8[32768]{0}', space=vmem, size = 0x8000, scoped, tag = 'input window, operand 2, single buffered']
    #allocation8 [shape = 'u8[32768]{0}', space=vmem, size = 0x8000, scoped, tag = 'input window, operand 3, single buffered']
    #allocation9 [shape = 's32[1]{0}', space=sflag, size = 0x4, scoped, tag = 'scoped memory for tpu_custom_call.1']
    #allocation10 [shape = 'u8[8192]{0}', space=vmem, size = 0x2000, scoped, tag = 'output window, operand 0']
    %10 = vsyncpa [#allocation3], 0
    %s11 = scalar_lea.sflag [#allocation3], 1
    %12 = vsyncpa %s11, 0
    %13 = vsyncpa [#allocation6], 0
    %14 = vsyncpa [#allocation9], 0
    %15 = vsyncpa [#allocation4], 0
    %s16 = scalar_lea.sflag [#allocation4], 1
    %17 = vsyncpa %s16, 0
    loop: start=0, step=1, limit=4
    $region2: #{tpu_custom_call.1} parent=1 // loop_pre_header
      _
    $region3: #{tpu_custom_call.1} parent=1 // loop_header
      %s19 = sphi 0, %s23
      %p20 = scmp.ge.s32.totalorder %s19, 4
      %s29 = sphi 0, %s31
      %s32 = sphi 0, %s29
      %s33 = sphi 0, %s32
      %s49 = sphi 0, %s33
      %s53 = sphi 0, %s53
      %s55 = sphi 0, %s53
      %s56 = sphi 0, %s55
      %s70 = sphi 0, %s56
      %s74 = sphi 0, %s74
      %s76 = sphi 0, %s74
      %s77 = sphi 0, %s76
      %s91 = sphi 0, %s77
      %s95 = sphi 0, %s95
      %s97 = sphi 0, %s95
      %s98 = sphi 0, %s97
      %s112 = sphi 0, %s98
      %s116 = sphi 0, %s116
      %s118 = sphi 0, %s116
      %s119 = sphi 0, %s118
      %s133 = sphi 0, %s119
      %s139 = sphi 0, %s141
      %s142 = sphi 0, %s139
      %s143 = sphi 0, %s142
      %s159 = sphi 0, %s143
    $region4: #{tpu_custom_call.1} parent=1 // loop_header_branch
      %22 = sbr.rel (%p20) target = $region8
    $region5: #{tpu_custom_call.1} parent=1 // loop_body
      %s24 = ssub.s32 %s19, 1
      %s25 = ssub.s32 %s19, 2
      %s26 = sadd.s32 %s19, 1
      %s27 = ssub.s32 %s19, %s26
      %p28 = scmp.eq.s32.totalorder %s27, 0
      %s30 = sadd.s32 %s29, 1
      %s31 = scalar_select %p28, %s29, %s30
      %p34 = pneg %p28
      %p35 = scmp.eq.s32.totalorder %s19, 1
      %p36 = por %p34, %p35
      %p37 = scmp.ne.s32.totalorder %s29, %s32
      %p38 = scmp.eq.s32.totalorder %s19, 0
      %p39 = por %p37, %p38
      %p40 = scmp.ne.s32.totalorder %s29, %s32
      %p41 = scmp.eq.s32.totalorder %s24, 1
      %p42 = por %p40, %p41
      %p43 = scmp.ne.s32.totalorder %s32, %s33
      %p44 = scmp.eq.s32.totalorder %s24, 0
      %p45 = por %p43, %p44
      %p46 = scmp.ne.s32.totalorder %s32, %s33
      %p47 = scmp.eq.s32.totalorder %s25, 1
      %p48 = por %p46, %p47
      %p50 = scmp.ne.s32.totalorder %s33, %s49
      %p51 = scmp.eq.s32.totalorder %s25, 0
      %p52 = por %p50, %p51
      %s54 = sadd.s32 %s53, 1
      %p57 = scmp.eq.s32.totalorder %s19, 1
      %p58 = scmp.ne.s32.totalorder %s53, %s55
      %p59 = scmp.eq.s32.totalorder %s19, 0
      %p60 = por %p58, %p59
      %p61 = scmp.ne.s32.totalorder %s53, %s55
      %p62 = scmp.eq.s32.totalorder %s24, 1
      %p63 = por %p61, %p62
      %p64 = scmp.ne.s32.totalorder %s55, %s56
      %p65 = scmp.eq.s32.totalorder %s24, 0
      %p66 = por %p64, %p65
      %p67 = scmp.ne.s32.totalorder %s55, %s56
      %p68 = scmp.eq.s32.totalorder %s25, 1
      %p69 = por %p67, %p68
      %p71 = scmp.ne.s32.totalorder %s56, %s70
      %p72 = scmp.eq.s32.totalorder %s25, 0
      %p73 = por %p71, %p72
      %s75 = sadd.s32 %s74, 1
      %p78 = scmp.eq.s32.totalorder %s19, 1
      %p79 = scmp.ne.s32.totalorder %s74, %s76
      %p80 = scmp.eq.s32.totalorder %s19, 0
      %p81 = por %p79, %p80
      %p82 = scmp.ne.s32.totalorder %s74, %s76
      %p83 = scmp.eq.s32.totalorder %s24, 1
      %p84 = por %p82, %p83
      %p85 = scmp.ne.s32.totalorder %s76, %s77
      %p86 = scmp.eq.s32.totalorder %s24, 0
      %p87 = por %p85, %p86
      %p88 = scmp.ne.s32.totalorder %s76, %s77
      %p89 = scmp.eq.s32.totalorder %s25, 1
      %p90 = por %p88, %p89
      %p92 = scmp.ne.s32.totalorder %s77, %s91
      %p93 = scmp.eq.s32.totalorder %s25, 0
      %p94 = por %p92, %p93
      %s96 = sadd.s32 %s95, 1
      %p99 = scmp.eq.s32.totalorder %s19, 1
      %p100 = scmp.ne.s32.totalorder %s95, %s97
      %p101 = scmp.eq.s32.totalorder %s19, 0
      %p102 = por %p100, %p101
      %p103 = scmp.ne.s32.totalorder %s95, %s97
      %p104 = scmp.eq.s32.totalorder %s24, 1
      %p105 = por %p103, %p104
      %p106 = scmp.ne.s32.totalorder %s97, %s98
      %p107 = scmp.eq.s32.totalorder %s24, 0
      %p108 = por %p106, %p107
      %p109 = scmp.ne.s32.totalorder %s97, %s98
      %p110 = scmp.eq.s32.totalorder %s25, 1
      %p111 = por %p109, %p110
      %p113 = scmp.ne.s32.totalorder %s98, %s112
      %p114 = scmp.eq.s32.totalorder %s25, 0
      %p115 = por %p113, %p114
      %s117 = sadd.s32 %s116, 1
      %p120 = scmp.eq.s32.totalorder %s19, 1
      %p121 = scmp.ne.s32.totalorder %s116, %s118
      %p122 = scmp.eq.s32.totalorder %s19, 0
      %p123 = por %p121, %p122
      %p124 = scmp.ne.s32.totalorder %s116, %s118
      %p125 = scmp.eq.s32.totalorder %s24, 1
      %p126 = por %p124, %p125
      %p127 = scmp.ne.s32.totalorder %s118, %s119
      %p128 = scmp.eq.s32.totalorder %s24, 0
      %p129 = por %p127, %p128
      %p130 = scmp.ne.s32.totalorder %s118, %s119
      %p131 = scmp.eq.s32.totalorder %s25, 1
      %p132 = por %p130, %p131
      %p134 = scmp.ne.s32.totalorder %s119, %s133
      %p135 = scmp.eq.s32.totalorder %s25, 0
      %p136 = por %p134, %p135
      %s137 = ssub.s32 %s19, %s26
      %p138 = scmp.eq.s32.totalorder %s137, 0
      %s140 = sadd.s32 %s139, 1
      %s141 = scalar_select %p138, %s139, %s140
      %p144 = pneg %p138
      %p145 = scmp.eq.s32.totalorder %s19, 1
      %p146 = por %p144, %p145
      %p147 = scmp.ne.s32.totalorder %s139, %s142
      %p148 = scmp.eq.s32.totalorder %s19, 0
      %p149 = por %p147, %p148
      %p150 = scmp.ne.s32.totalorder %s139, %s142
      %p151 = scmp.eq.s32.totalorder %s24, 1
      %p152 = por %p150, %p151
      %p153 = scmp.ne.s32.totalorder %s142, %s143
      %p154 = scmp.eq.s32.totalorder %s24, 0
      %p155 = por %p153, %p154
      %p156 = scmp.ne.s32.totalorder %s142, %s143
      %p157 = scmp.eq.s32.totalorder %s25, 1
      %p158 = por %p156, %p157
      %p160 = scmp.ne.s32.totalorder %s143, %s159
      %p161 = scmp.eq.s32.totalorder %s25, 0
      %p162 = por %p160, %p161
      %p163 = scmp.le.s32.totalorder 1, %s19
      %p164 = scmp.lt.s32.totalorder %s19, 3
      %p165 = pnand %p163, %p164
      %p166 = pneg %p165
      // Predicated region
      $region9: #{tpu_custom_call.1} parent=5 // pred_check
        _
      $region10: #{tpu_custom_call.1} parent=5 // pred_check_branch
        %168 = sbr.rel (%p165) target = $region12
      $region11: #{tpu_custom_call.1} parent=5 // pred_region
        %s169 = ssub.s32 %s19, 1
        // Predicated region
        $region13: #{tpu_custom_call.1} parent=11 // pred_check
          %p170 = pneg %p66
        $region14: #{tpu_custom_call.1} parent=11 // pred_check_branch
          %172 = sbr.rel (%p170) target = $region16
        $region15: #{tpu_custom_call.1} parent=11 // pred_region
          %s174 = ssub.s32 256, 256
          %175 = vsyncadd [#allocation6], %s174
          %s176 = sshll.u32 [#allocation5], 4
          %s177 = int_to_ptr.vmem [resolvable:$true] %s176
          %182 = dma.hbm_to_vmem [thread:$0]  %s1, 256, %s177, [#allocation6], 64, 64, 4
        $region16: #{tpu_custom_call.1} parent=11 // pred_fallthru
          _
        // Predicated region
        $region17: #{tpu_custom_call.1} parent=11 // pred_check
          %p183 = pneg %p87
        $region18: #{tpu_custom_call.1} parent=11 // pred_check_branch
          %185 = sbr.rel (%p183) target = $region20
        $region19: #{tpu_custom_call.1} parent=11 // pred_region
          %s187 = ssub.s32 1024, 1024
          %188 = vsyncadd [#allocation6], %s187
          %s189 = sshll.u32 [#allocation7], 4
          %s190 = int_to_ptr.vmem [resolvable:$true] %s189
          %195 = dma.hbm_to_vmem [thread:$0]  %s2, 1024, %s190, [#allocation6], 64, 64, 4
        $region20: #{tpu_custom_call.1} parent=11 // pred_fallthru
          _
        // Predicated region
        $region21: #{tpu_custom_call.1} parent=11 // pred_check
          %p196 = pneg %p108
        $region22: #{tpu_custom_call.1} parent=11 // pred_check_branch
          %198 = sbr.rel (%p196) target = $region24
        $region23: #{tpu_custom_call.1} parent=11 // pred_region
          %s200 = ssub.s32 1024, 1024
          %201 = vsyncadd [#allocation9], %s200
          %s202 = sshll.u32 [#allocation8], 4
          %s203 = int_to_ptr.vmem [resolvable:$true] %s202
          %208 = dma.hbm_to_vmem [thread:$0]  %s3, 1024, %s203, [#allocation9], 64, 64, 4
        $region24: #{tpu_custom_call.1} parent=11 // pred_fallthru
          _
        // Predicated region
        $region25: #{tpu_custom_call.1} parent=11 // pred_check
          %p209 = pneg %p129
        $region26: #{tpu_custom_call.1} parent=11 // pred_check_branch
          %211 = sbr.rel (%p209) target = $region28
        $region27: #{tpu_custom_call.1} parent=11 // pred_region
          _
        $region28: #{tpu_custom_call.1} parent=11 // pred_fallthru
          _
      $region12: #{tpu_custom_call.1} parent=5 // pred_fallthru
        _
      %p212 = scmp.lt.s32.totalorder %s19, 2
      // Predicated region
      $region29: #{tpu_custom_call.1} parent=5 // pred_check
        %p213 = pneg %p212
      $region30: #{tpu_custom_call.1} parent=5 // pred_check_branch
        %215 = sbr.rel (%p213) target = $region32
      $region31: #{tpu_custom_call.1} parent=5 // pred_region
        // Predicated region
        $region33: #{tpu_custom_call.1} parent=31 // pred_check
          %p216 = pneg %p39
        $region34: #{tpu_custom_call.1} parent=31 // pred_check_branch
          %218 = sbr.rel (%p216) target = $region36
        $region35: #{tpu_custom_call.1} parent=31 // pred_region
          %s219 = sand.u32 %s29, 1
          %s220 = scalar_lea.sflag [#allocation3], %s219
          %s221 = sand.u32 %s29, 1
          %s222 = smul.addr %s221, 8
          %s223 = scalar_lea.vmem [#allocation2], %s222
          %s225 = ssub.s32 128, 128
          %226 = vsyncadd %s220, %s225
          %s227 = smul.addr %s19, 128
          %s228 = scalar_lea.hbm %s0, %s227
          %s230 = sshll.u32 %s223, 4
          %s231 = int_to_ptr.vmem [resolvable:$true] %s230
          %233 = dma.hbm_to_vmem [thread:$0]  %s228, 128, %s231, %s220
        $region36: #{tpu_custom_call.1} parent=31 // pred_fallthru
          _
      $region32: #{tpu_custom_call.1} parent=5 // pred_fallthru
        _
      %p234 = scmp.le.s32.totalorder 1, %s19
      %p235 = scmp.lt.s32.totalorder %s19, 3
      %p236 = pnand %p234, %p235
      %p237 = pneg %p236
      // Predicated region
      $region37: #{tpu_custom_call.1} parent=5 // pred_check
        _
      $region38: #{tpu_custom_call.1} parent=5 // pred_check_branch
        %239 = sbr.rel (%p236) target = $region40
      $region39: #{tpu_custom_call.1} parent=5 // pred_region
        %s240 = ssub.s32 %s19, 1
        %s241 = sand.u32 %s32, 1
        %s242 = scalar_lea.sflag [#allocation3], %s241
        %s243 = sand.u32 %s32, 1
        %s244 = smul.addr %s243, 8
        %s245 = scalar_lea.vmem [#allocation2], %s244
        // Predicated region
        $region41: #{tpu_custom_call.1} parent=39 // pred_check
          %p246 = pneg %p45
        $region42: #{tpu_custom_call.1} parent=39 // pred_check_branch
          %248 = sbr.rel (%p246) target = $region44
        $region43: #{tpu_custom_call.1} parent=39 // pred_region
          %249 = dma.done %s242, 128
        $region44: #{tpu_custom_call.1} parent=39 // pred_fallthru
          _
        // Predicated region
        $region45: #{tpu_custom_call.1} parent=39 // pred_check
          %p250 = pneg %p66
        $region46: #{tpu_custom_call.1} parent=39 // pred_check_branch
          %252 = sbr.rel (%p250) target = $region48
        $region47: #{tpu_custom_call.1} parent=39 // pred_region
          %253 = dma.done [#allocation6], 256
        $region48: #{tpu_custom_call.1} parent=39 // pred_fallthru
          _
        // Predicated region
        $region49: #{tpu_custom_call.1} parent=39 // pred_check
          %p254 = pneg %p87
        $region50: #{tpu_custom_call.1} parent=39 // pred_check_branch
          %256 = sbr.rel (%p254) target = $region52
        $region51: #{tpu_custom_call.1} parent=39 // pred_region
          %257 = dma.done [#allocation6], 1024
        $region52: #{tpu_custom_call.1} parent=39 // pred_fallthru
          _
        // Predicated region
        $region53: #{tpu_custom_call.1} parent=39 // pred_check
          %p258 = pneg %p108
        $region54: #{tpu_custom_call.1} parent=39 // pred_check_branch
          %260 = sbr.rel (%p258) target = $region56
        $region55: #{tpu_custom_call.1} parent=39 // pred_region
          %261 = dma.done [#allocation9], 1024
        $region56: #{tpu_custom_call.1} parent=39 // pred_fallthru
          _
        %s262 = sand.u32 %s32, 1
        %s263 = scalar_lea.sflag [#allocation3], %s262
        %s264 = sand.u32 %s32, 1
        %s265 = smul.addr %s264, 8
        %s266 = scalar_lea.vmem [#allocation2], %s265
        %p267 = pneg %p45
        %p268 = pneg %p42
        %p269 = pneg %p66
        %p270 = pneg %p63
        %p271 = pneg %p87
        %p272 = pneg %p84
        %p273 = pneg %p108
        %p274 = pneg %p105
        %p275 = pneg %p129
        %p276 = pneg %p126
        %p277 = pneg %p155
        %p278 = pneg %p152
        %s279 = sand.u32 %s142, 1
        %s280 = scalar_lea.sflag [#allocation4], %s279
        %s281 = sand.u32 %s142, 1
        %s282 = smul.addr %s281, 8
        %s283 = scalar_lea.vmem [#allocation10], %s282
        %v285 = vld [vmem:[%s245] sm:$0xff]
        %v286 = vld [vmem:[%s4] sm:$0x1]
        %v287 = vld [vmem:[%s4 + $0x1] sm:$0x1]
        %v288 = vld [vmem:[%s4 + $0x2] sm:$0x1]
        %v289 = vpack.c.bf16 %v285, %v285
        %v290 = vld [vmem:[#allocation5] sm:$0xf]
        %v291 = vld [vmem:[#allocation5 + $0x4] sm:$0xf]
        %v292 = vld [vmem:[#allocation5 + $0x8] sm:$0xf]
        %v293 = vld [vmem:[#allocation5 + $0xc] sm:$0xf]
        %v295 = vlaneseq
        %v296 = vshrl.u32 %v295, 7
        %v297 = vsub.s32 0, %v296
        %v298 = vrot.slane %v286, %v297
        %v304 = vunpack.c.l.b16 %v290
        %v305 = vunpack.c.l.b16 %v291
        %v306 = vunpack.c.l.b16 %v292
        %v307 = vunpack.c.l.b16 %v293
        %v308 = vpack.c.b16 %v305, %v304
        %v309 = vpack.c.b16 %v307, %v306
        %vm312 = vcmask 261120
        %v314 = vsel %vm312, %v289, 0
        %316 = vmatprep.subr.bf16.mxu0 0
        %317 = vmatpush1.bf16.msra.mxu0 %v308
        %318 = vmatprep.subr.bf16.mxu0 0
        %319 = vmatpush1.bf16.msra.mxu0 %v309
        %320 = vmatprep.subr.bf16.mxu0 0
        %321 = vmatpush1.bf16.msra.mxu0 0
        %322 = vmatprep.subr.bf16.mxu0 0
        %323 = vmatpush1.bf16.msra.mxu0 0
        %324 = vmatprep.subr.bf16.mxu0 0
        %325 = vmatpush1.bf16.msra.mxu0 0
        %326 = vmatprep.subr.bf16.mxu0 0
        %327 = vmatpush1.bf16.msra.mxu0 0
        %328 = vmatprep.subr.bf16.mxu0 0
        %329 = vmatpush1.bf16.msra.mxu0 0
        %330 = vmatprep.subr.bf16.mxu0 0
        %331 = vmatpush1.bf16.msra.mxu0 0
        %332 = vmatprep.subr.bf16.mxu0 0
        %333 = vmatpush1.bf16.msra.mxu0 0
        %334 = vmatprep.subr.bf16.mxu0 0
        %335 = vmatpush1.bf16.msra.mxu0 0
        %336 = vmatprep.subr.bf16.mxu0 0
        %337 = vmatpush1.bf16.msra.mxu0 0
        %338 = vmatprep.subr.bf16.mxu0 0
        %339 = vmatpush1.bf16.msra.mxu0 0
        %340 = vmatprep.subr.bf16.mxu0 0
        %341 = vmatpush1.bf16.msra.mxu0 0
        %342 = vmatprep.subr.bf16.mxu0 0
        %343 = vmatpush1.bf16.msra.mxu0 0
        %344 = vmatprep.subr.bf16.mxu0 0
        %345 = vmatpush1.bf16.msra.mxu0 0
        %346 = vmatprep.subr.bf16.mxu0 0
        %347 = vmatpush1.bf16.msra.mxu0 0
        %348 = vmatprep.mubr.bf16.mxu0 0
        %349 = vmatmul.mubr.bf16.gmra.mrb[0].mxu0 %v314
        %v350 = vpop.f32.mrb[0].mxu0
        %v351 = vadd.f32 %v298, %v350
        %v352 = vpop.f32.mrb[0].mxu0
        %v353 = vpop.f32.mrb[0].mxu0
        %v354 = vpop.f32.mrb[0].mxu0
        %355 = vdwg.mxu0
        %v356 = vmax.f32 %v351, 0.0
        %v357 = vpack.c.bf16 %v356, %v356
        %v358 = vld [vmem:[#allocation7] sm:$0xf]
        %v359 = vld [vmem:[#allocation7 + $0x4] sm:$0xf]
        %v360 = vld [vmem:[#allocation7 + $0x8] sm:$0xf]
        %v361 = vld [vmem:[#allocation7 + $0xc] sm:$0xf]
        %v362 = vld [vmem:[#allocation7 + $0x10] sm:$0xf]
        %v363 = vld [vmem:[#allocation7 + $0x14] sm:$0xf]
        %v364 = vld [vmem:[#allocation7 + $0x18] sm:$0xf]
        %v365 = vld [vmem:[#allocation7 + $0x1c] sm:$0xf]
        %v366 = vld [vmem:[#allocation7 + $0x20] sm:$0xf]
        %v367 = vld [vmem:[#allocation7 + $0x24] sm:$0xf]
        %v368 = vld [vmem:[#allocation7 + $0x28] sm:$0xf]
        %v369 = vld [vmem:[#allocation7 + $0x2c] sm:$0xf]
        %v370 = vld [vmem:[#allocation7 + $0x30] sm:$0xf]
        %v371 = vld [vmem:[#allocation7 + $0x34] sm:$0xf]
        %v372 = vld [vmem:[#allocation7 + $0x38] sm:$0xf]
        %v373 = vld [vmem:[#allocation7 + $0x3c] sm:$0xf]
        %v375 = vlaneseq
        %v376 = vshrl.u32 %v375, 7
        %v377 = vsub.s32 0, %v376
        %v378 = vrot.slane %v287, %v377
        %v396 = vunpack.c.l.b16 %v358
        %v397 = vunpack.c.l.b16 %v359
        %v398 = vunpack.c.l.b16 %v360
        %v399 = vunpack.c.l.b16 %v361
        %v400 = vunpack.c.l.b16 %v362
        %v401 = vunpack.c.l.b16 %v363
        %v402 = vunpack.c.l.b16 %v364
        %v403 = vunpack.c.l.b16 %v365
        %v404 = vunpack.c.l.b16 %v366
        %v405 = vunpack.c.l.b16 %v367
        %v406 = vunpack.c.l.b16 %v368
        %v407 = vunpack.c.l.b16 %v369
        %v408 = vunpack.c.l.b16 %v370
        %v409 = vunpack.c.l.b16 %v371
        %v410 = vunpack.c.l.b16 %v372
        %v411 = vunpack.c.l.b16 %v373
        %v412 = vpack.c.b16 %v397, %v396
        %v413 = vpack.c.b16 %v399, %v398
        %v414 = vpack.c.b16 %v401, %v400
        %v415 = vpack.c.b16 %v403, %v402
        %v416 = vpack.c.b16 %v405, %v404
        %v417 = vpack.c.b16 %v407, %v406
        %v418 = vpack.c.b16 %v409, %v408
        %v419 = vpack.c.b16 %v411, %v410
        %428 = vmatprep.subr.bf16.mxu0 0
        %429 = vmatpush1.bf16.msra.mxu0 %v412
        %430 = vmatprep.subr.bf16.mxu0 0
        %431 = vmatpush1.bf16.msra.mxu0 %v413
        %432 = vmatprep.subr.bf16.mxu0 0
        %433 = vmatpush1.bf16.msra.mxu0 %v414
        %434 = vmatprep.subr.bf16.mxu0 0
        %435 = vmatpush1.bf16.msra.mxu0 %v415
        %436 = vmatprep.subr.bf16.mxu0 0
        %437 = vmatpush1.bf16.msra.mxu0 %v416
        %438 = vmatprep.subr.bf16.mxu0 0
        %439 = vmatpush1.bf16.msra.mxu0 %v417
        %440 = vmatprep.subr.bf16.mxu0 0
        %441 = vmatpush1.bf16.msra.mxu0 %v418
        %442 = vmatprep.subr.bf16.mxu0 0
        %443 = vmatpush1.bf16.msra.mxu0 %v419
        %444 = vmatprep.subr.bf16.mxu0 0
        %445 = vmatpush1.bf16.msra.mxu0 0
        %446 = vmatprep.subr.bf16.mxu0 0
        %447 = vmatpush1.bf16.msra.mxu0 0
        %448 = vmatprep.subr.bf16.mxu0 0
        %449 = vmatpush1.bf16.msra.mxu0 0
        %450 = vmatprep.subr.bf16.mxu0 0
        %451 = vmatpush1.bf16.msra.mxu0 0
        %452 = vmatprep.subr.bf16.mxu0 0
        %453 = vmatpush1.bf16.msra.mxu0 0
        %454 = vmatprep.subr.bf16.mxu0 0
        %455 = vmatpush1.bf16.msra.mxu0 0
        %456 = vmatprep.subr.bf16.mxu0 0
        %457 = vmatpush1.bf16.msra.mxu0 0
        %458 = vmatprep.subr.bf16.mxu0 0
        %459 = vmatpush1.bf16.msra.mxu0 0
        %460 = vmatprep.mubr.bf16.mxu0 0
        %461 = vmatmul.mubr.bf16.gmra.mrb[0].mxu0 %v357
        %v462 = vpop.f32.mrb[0].mxu0
        %v463 = vadd.f32 %v378, %v462
        %v464 = vpop.f32.mrb[0].mxu0
        %v465 = vpop.f32.mrb[0].mxu0
        %v466 = vpop.f32.mrb[0].mxu0
        %467 = vdwg.mxu0
        %v468 = vmax.f32 %v463, 0.0
        %v469 = vpack.c.bf16 %v468, %v468
        %v470 = vld [vmem:[#allocation8] sm:$0xf]
        %v471 = vld [vmem:[#allocation8 + $0x4] sm:$0xf]
        %v472 = vld [vmem:[#allocation8 + $0x8] sm:$0xf]
        %v473 = vld [vmem:[#allocation8 + $0xc] sm:$0xf]
        %v474 = vld [vmem:[#allocation8 + $0x10] sm:$0xf]
        %v475 = vld [vmem:[#allocation8 + $0x14] sm:$0xf]
        %v476 = vld [vmem:[#allocation8 + $0x18] sm:$0xf]
        %v477 = vld [vmem:[#allocation8 + $0x1c] sm:$0xf]
        %v478 = vld [vmem:[#allocation8 + $0x20] sm:$0xf]
        %v479 = vld [vmem:[#allocation8 + $0x24] sm:$0xf]
        %v480 = vld [vmem:[#allocation8 + $0x28] sm:$0xf]
        %v481 = vld [vmem:[#allocation8 + $0x2c] sm:$0xf]
        %v482 = vld [vmem:[#allocation8 + $0x30] sm:$0xf]
        %v483 = vld [vmem:[#allocation8 + $0x34] sm:$0xf]
        %v484 = vld [vmem:[#allocation8 + $0x38] sm:$0xf]
        %v485 = vld [vmem:[#allocation8 + $0x3c] sm:$0xf]
        %v487 = vlaneseq
        %v488 = vshrl.u32 %v487, 7
        %v489 = vsub.s32 0, %v488
        %v490 = vrot.slane %v288, %v489
        %v508 = vunpack.c.l.b16 %v470
        %v509 = vunpack.c.l.b16 %v471
        %v510 = vunpack.c.l.b16 %v472
        %v511 = vunpack.c.l.b16 %v473
        %v512 = vunpack.c.l.b16 %v474
        %v513 = vunpack.c.l.b16 %v475
        %v514 = vunpack.c.l.b16 %v476
        %v515 = vunpack.c.l.b16 %v477
        %v516 = vunpack.c.l.b16 %v478
        %v517 = vunpack.c.l.b16 %v479
        %v518 = vunpack.c.l.b16 %v480
        %v519 = vunpack.c.l.b16 %v481
        %v520 = vunpack.c.l.b16 %v482
        %v521 = vunpack.c.l.b16 %v483
        %v522 = vunpack.c.l.b16 %v484
        %v523 = vunpack.c.l.b16 %v485
        %v524 = vpack.c.b16 %v509, %v508
        %v525 = vpack.c.b16 %v511, %v510
        %v526 = vpack.c.b16 %v513, %v512
        %v527 = vpack.c.b16 %v515, %v514
        %v528 = vpack.c.b16 %v517, %v516
        %v529 = vpack.c.b16 %v519, %v518
        %v530 = vpack.c.b16 %v521, %v520
        %v531 = vpack.c.b16 %v523, %v522
        %540 = vmatprep.subr.bf16.mxu0 0
        %541 = vmatpush1.bf16.msra.mxu0 %v524
        %542 = vmatprep.subr.bf16.mxu0 0
        %543 = vmatpush1.bf16.msra.mxu0 %v525
        %544 = vmatprep.subr.bf16.mxu0 0
        %545 = vmatpush1.bf16.msra.mxu0 %v526
        %546 = vmatprep.subr.bf16.mxu0 0
        %547 = vmatpush1.bf16.msra.mxu0 %v527
        %548 = vmatprep.subr.bf16.mxu0 0
        %549 = vmatpush1.bf16.msra.mxu0 %v528
        %550 = vmatprep.subr.bf16.mxu0 0
        %551 = vmatpush1.bf16.msra.mxu0 %v529
        %552 = vmatprep.subr.bf16.mxu0 0
        %553 = vmatpush1.bf16.msra.mxu0 %v530
        %554 = vmatprep.subr.bf16.mxu0 0
        %555 = vmatpush1.bf16.msra.mxu0 %v531
        %556 = vmatprep.subr.bf16.mxu0 0
        %557 = vmatpush1.bf16.msra.mxu0 0
        %558 = vmatprep.subr.bf16.mxu0 0
        %559 = vmatpush1.bf16.msra.mxu0 0
        %560 = vmatprep.subr.bf16.mxu0 0
        %561 = vmatpush1.bf16.msra.mxu0 0
        %562 = vmatprep.subr.bf16.mxu0 0
        %563 = vmatpush1.bf16.msra.mxu0 0
        %564 = vmatprep.subr.bf16.mxu0 0
        %565 = vmatpush1.bf16.msra.mxu0 0
        %566 = vmatprep.subr.bf16.mxu0 0
        %567 = vmatpush1.bf16.msra.mxu0 0
        %568 = vmatprep.subr.bf16.mxu0 0
        %569 = vmatpush1.bf16.msra.mxu0 0
        %570 = vmatprep.subr.bf16.mxu0 0
        %571 = vmatpush1.bf16.msra.mxu0 0
        %572 = vmatprep.mubr.bf16.mxu0 0
        %573 = vmatmul.mubr.bf16.gmra.mrb[0].mxu0 %v469
        %v574 = vpop.f32.mrb[0].mxu0
        %v575 = vadd.f32 %v490, %v574
        %v576 = vpop.f32.mrb[0].mxu0
        %v577 = vpop.f32.mrb[0].mxu0
        %v578 = vpop.f32.mrb[0].mxu0
        %579 = vdwg.mxu0
        %580 = vst [vmem:[%s283] sm:$0xff] %v575
        %s581 = sand.u32 %s142, 1
        %s582 = scalar_lea.sflag [#allocation4], %s581
        %s583 = sand.u32 %s142, 1
        %s584 = smul.addr %s583, 8
        %s585 = scalar_lea.vmem [#allocation10], %s584
        // Predicated region
        $region57: #{tpu_custom_call.1} parent=39 // pred_check
          %p586 = pneg %p152
        $region58: #{tpu_custom_call.1} parent=39 // pred_check_branch
          %588 = sbr.rel (%p586) target = $region60
        $region59: #{tpu_custom_call.1} parent=39 // pred_region
          %s590 = ssub.s32 128, 128
          %591 = vsyncadd %s582, %s590
          %s592 = smul.addr %s24, 128
          %s593 = scalar_lea.hbm %s5, %s592
          %s595 = sshll.u32 %s585, 4
          %s596 = int_to_ptr.vmem [resolvable:$true] %s595
          %598 = dma.vmem_to_hbm [thread:$0]  %s596, 128, %s593, %s582
        $region60: #{tpu_custom_call.1} parent=39 // pred_fallthru
          _
      $region40: #{tpu_custom_call.1} parent=5 // pred_fallthru
        _
      %p599 = scmp.le.s32.totalorder 2, %s19
      // Predicated region
      $region61: #{tpu_custom_call.1} parent=5 // pred_check
        %p600 = pneg %p599
      $region62: #{tpu_custom_call.1} parent=5 // pred_check_branch
        %602 = sbr.rel (%p600) target = $region64
      $region63: #{tpu_custom_call.1} parent=5 // pred_region
        %s603 = ssub.s32 %s19, 2
        // Predicated region
        $region65: #{tpu_custom_call.1} parent=63 // pred_check
          %p604 = pneg %p158
        $region66: #{tpu_custom_call.1} parent=63 // pred_check_branch
          %606 = sbr.rel (%p604) target = $region68
        $region67: #{tpu_custom_call.1} parent=63 // pred_region
          %s607 = sand.u32 %s143, 1
          %s608 = scalar_lea.sflag [#allocation4], %s607
          %s609 = sand.u32 %s143, 1
          %s610 = smul.addr %s609, 8
          %s611 = scalar_lea.vmem [#allocation10], %s610
          %612 = dma.done %s608, 128
        $region68: #{tpu_custom_call.1} parent=63 // pred_fallthru
          _
      $region64: #{tpu_custom_call.1} parent=5 // pred_fallthru
        _
    $region6: #{tpu_custom_call.1} parent=1 // loop_footer
      %s23 = sadd.s32 1, %s19
    $region7: #{tpu_custom_call.1} parent=1 // loop_footer_branch
      %18 = sbr.rel target = $region3
    $region8: #{tpu_custom_call.1} parent=1 // loop_exit
      _
    %613 = vsyncpa [#allocation3], 1
    %s614 = scalar_lea.sflag [#allocation3], 1
    %615 = vsyncpa %s614, 1
    %616 = vsyncpa [#allocation6], 1
    %617 = vsyncpa [#allocation9], 1
    %618 = vsyncpa [#allocation4], 1
    %s619 = scalar_lea.sflag [#allocation4], 1
    %620 = vsyncpa %s619, 1

// kernel: tpu_custom_call.1
$region0: #{tpu_custom_call.1}
  #allocation0 [shape = 'u32[]', space=smem, size = 0x4, offset = 0x4, fixed_abs, tag = 'smem constant byte address 0x4 - core index']
  #allocation1 [shape = 'u32[144,128]{1,0:T(1,128)}', space=vmem, size = 0x12000, scoped, tag = 'internal scratch']
  %s0 = inlined_call_operand.hbm [shape: f32[16,32], index: 0, kind: input, shape index: {}]
  %s1 = inlined_call_operand.hbm [shape: bf16[32,128], index: 1, kind: input, shape index: {}]
  %s2 = inlined_call_operand.hbm [shape: bf16[128,128], index: 2, kind: input, shape index: {}]
  %s3 = inlined_call_operand.hbm [shape: bf16[128,128], index: 3, kind: input, shape index: {}]
  %s4 = inlined_call_operand.vmem [shape: f32[1,384], index: 4, kind: input, shape index: {}]
  %s5 = inlined_call_operand.hbm [shape: f32[16,128], index: 5, kind: output, shape index: {}]
  %s6 = sld [smem:[#allocation0]]
  $region69: #{tpu_custom_call.1} parent=0
    _
  %s8 = ssub.s32 1, %s6
  %s9 = scalar_select 0, %s8, %s6
  $region1: #{tpu_custom_call.1} parent=0
    #allocation2 [shape = 'u8[8192]{0}', space=vmem, size = 0x2000, scoped, tag = 'input window, operand 0']
    #allocation3 [shape = 's32[2]{0}', space=sflag, size = 0x8, scoped, tag = 'scoped memory for tpu_custom_call.1']
    #allocation4 [shape = 's32[2]{0}', space=sflag, size = 0x8, scoped, tag = 'scoped memory for tpu_custom_call.1']
    #allocation5 [shape = 'u8[8192]{0}', space=vmem, size = 0x2000, scoped, tag = 'input window, operand 1, single buffered']
    #allocation6 [shape = 's32[1]{0}', space=sflag, size = 0x4, scoped, tag = 'scoped memory for tpu_custom_call.1']
    #allocation7 [shape = 'u8[32768]{0}', space=vmem, size = 0x8000, scoped, tag = 'input window, operand 2, single buffered']
    #allocation8 [shape = 'u8[32768]{0}', space=vmem, size = 0x8000, scoped, tag = 'input window, operand 3, single buffered']
    #allocation9 [shape = 's32[1]{0}', space=sflag, size = 0x4, scoped, tag = 'scoped memory for tpu_custom_call.1']
    #allocation10 [shape = 'u8[8192]{0}', space=vmem, size = 0x2000, scoped, tag = 'output window, operand 0']
    %10 = vsyncpa [#allocation3], 0
    %s11 = scalar_lea.sflag [#allocation3], 1
    %12 = vsyncpa %s11, 0
    %13 = vsyncpa [#allocation6], 0
    %14 = vsyncpa [#allocation9], 0
    %15 = vsyncpa [#allocation4], 0
    %s16 = scalar_lea.sflag [#allocation4], 1
    %17 = vsyncpa %s16, 0
    loop: start=0, step=1, limit=4
    $region2: #{tpu_custom_call.1} parent=1 // loop_pre_header
      _
    $region3: #{tpu_custom_call.1} parent=1 // loop_header
      %s19 = sphi 0, %s23
      %p20 = scmp.ge.s32.totalorder %s19, 4
      %s29 = sphi 0, %s31
      %s32 = sphi 0, %s29
      %s33 = sphi 0, %s32
      %s49 = sphi 0, %s33
      %s53 = sphi 0, %s53
      %s55 = sphi 0, %s53
      %s56 = sphi 0, %s55
      %s70 = sphi 0, %s56
      %s74 = sphi 0, %s74
      %s76 = sphi 0, %s74
      %s77 = sphi 0, %s76
      %s91 = sphi 0, %s77
      %s95 = sphi 0, %s95
      %s97 = sphi 0, %s95
      %s98 = sphi 0, %s97
      %s112 = sphi 0, %s98
      %s116 = sphi 0, %s116
      %s118 = sphi 0, %s116
      %s119 = sphi 0, %s118
      %s133 = sphi 0, %s119
      %s139 = sphi 0, %s141
      %s142 = sphi 0, %s139
      %s143 = sphi 0, %s142
      %s159 = sphi 0, %s143
    $region4: #{tpu_custom_call.1} parent=1 // loop_header_branch
      %22 = sbr.rel (%p20) target = $region8
    $region5: #{tpu_custom_call.1} parent=1 // loop_body
      %s24 = ssub.s32 %s19, 1
      %s25 = ssub.s32 %s19, 2
      %s26 = sadd.s32 %s19, 1
      %s27 = ssub.s32 %s19, %s26
      %p28 = scmp.eq.s32.totalorder %s27, 0
      %s30 = sadd.s32 %s29, 1
      %s31 = scalar_select %p28, %s29, %s30
      %p34 = pneg %p28
      %p35 = scmp.eq.s32.totalorder %s19, 1
      %p36 = por %p34, %p35
      %p37 = scmp.ne.s32.totalorder %s29, %s32
      %p38 = scmp.eq.s32.totalorder %s19, 0
      %p39 = por %p37, %p38
      %p40 = scmp.ne.s32.totalorder %s29, %s32
      %p41 = scmp.eq.s32.totalorder %s24, 1
      %p42 = por %p40, %p41
      %p43 = scmp.ne.s32.totalorder %s32, %s33
      %p44 = scmp.eq.s32.totalorder %s24, 0
      %p45 = por %p43, %p44
      %p46 = scmp.ne.s32.totalorder %s32, %s33
      %p47 = scmp.eq.s32.totalorder %s25, 1
      %p48 = por %p46, %p47
      %p50 = scmp.ne.s32.totalorder %s33, %s49
      %p51 = scmp.eq.s32.totalorder %s25, 0
      %p52 = por %p50, %p51
      %s54 = sadd.s32 %s53, 1
      %p57 = scmp.eq.s32.totalorder %s19, 1
      %p58 = scmp.ne.s32.totalorder %s53, %s55
      %p59 = scmp.eq.s32.totalorder %s19, 0
      %p60 = por %p58, %p59
      %p61 = scmp.ne.s32.totalorder %s53, %s55
      %p62 = scmp.eq.s32.totalorder %s24, 1
      %p63 = por %p61, %p62
      %p64 = scmp.ne.s32.totalorder %s55, %s56
      %p65 = scmp.eq.s32.totalorder %s24, 0
      %p66 = por %p64, %p65
      %p67 = scmp.ne.s32.totalorder %s55, %s56
      %p68 = scmp.eq.s32.totalorder %s25, 1
      %p69 = por %p67, %p68
      %p71 = scmp.ne.s32.totalorder %s56, %s70
      %p72 = scmp.eq.s32.totalorder %s25, 0
      %p73 = por %p71, %p72
      %s75 = sadd.s32 %s74, 1
      %p78 = scmp.eq.s32.totalorder %s19, 1
      %p79 = scmp.ne.s32.totalorder %s74, %s76
      %p80 = scmp.eq.s32.totalorder %s19, 0
      %p81 = por %p79, %p80
      %p82 = scmp.ne.s32.totalorder %s74, %s76
      %p83 = scmp.eq.s32.totalorder %s24, 1
      %p84 = por %p82, %p83
      %p85 = scmp.ne.s32.totalorder %s76, %s77
      %p86 = scmp.eq.s32.totalorder %s24, 0
      %p87 = por %p85, %p86
      %p88 = scmp.ne.s32.totalorder %s76, %s77
      %p89 = scmp.eq.s32.totalorder %s25, 1
      %p90 = por %p88, %p89
      %p92 = scmp.ne.s32.totalorder %s77, %s91
      %p93 = scmp.eq.s32.totalorder %s25, 0
      %p94 = por %p92, %p93
      %s96 = sadd.s32 %s95, 1
      %p99 = scmp.eq.s32.totalorder %s19, 1
      %p100 = scmp.ne.s32.totalorder %s95, %s97
      %p101 = scmp.eq.s32.totalorder %s19, 0
      %p102 = por %p100, %p101
      %p103 = scmp.ne.s32.totalorder %s95, %s97
      %p104 = scmp.eq.s32.totalorder %s24, 1
      %p105 = por %p103, %p104
      %p106 = scmp.ne.s32.totalorder %s97, %s98
      %p107 = scmp.eq.s32.totalorder %s24, 0
      %p108 = por %p106, %p107
      %p109 = scmp.ne.s32.totalorder %s97, %s98
      %p110 = scmp.eq.s32.totalorder %s25, 1
      %p111 = por %p109, %p110
      %p113 = scmp.ne.s32.totalorder %s98, %s112
      %p114 = scmp.eq.s32.totalorder %s25, 0
      %p115 = por %p113, %p114
      %s117 = sadd.s32 %s116, 1
      %p120 = scmp.eq.s32.totalorder %s19, 1
      %p121 = scmp.ne.s32.totalorder %s116, %s118
      %p122 = scmp.eq.s32.totalorder %s19, 0
      %p123 = por %p121, %p122
      %p124 = scmp.ne.s32.totalorder %s116, %s118
      %p125 = scmp.eq.s32.totalorder %s24, 1
      %p126 = por %p124, %p125
      %p127 = scmp.ne.s32.totalorder %s118, %s119
      %p128 = scmp.eq.s32.totalorder %s24, 0
      %p129 = por %p127, %p128
      %p130 = scmp.ne.s32.totalorder %s118, %s119
      %p131 = scmp.eq.s32.totalorder %s25, 1
      %p132 = por %p130, %p131
      %p134 = scmp.ne.s32.totalorder %s119, %s133
      %p135 = scmp.eq.s32.totalorder %s25, 0
      %p136 = por %p134, %p135
      %s137 = ssub.s32 %s19, %s26
      %p138 = scmp.eq.s32.totalorder %s137, 0
      %s140 = sadd.s32 %s139, 1
      %s141 = scalar_select %p138, %s139, %s140
      %p144 = pneg %p138
      %p145 = scmp.eq.s32.totalorder %s19, 1
      %p146 = por %p144, %p145
      %p147 = scmp.ne.s32.totalorder %s139, %s142
      %p148 = scmp.eq.s32.totalorder %s19, 0
      %p149 = por %p147, %p148
      %p150 = scmp.ne.s32.totalorder %s139, %s142
      %p151 = scmp.eq.s32.totalorder %s24, 1
      %p152 = por %p150, %p151
      %p153 = scmp.ne.s32.totalorder %s142, %s143
      %p154 = scmp.eq.s32.totalorder %s24, 0
      %p155 = por %p153, %p154
      %p156 = scmp.ne.s32.totalorder %s142, %s143
      %p157 = scmp.eq.s32.totalorder %s25, 1
      %p158 = por %p156, %p157
      %p160 = scmp.ne.s32.totalorder %s143, %s159
      %p161 = scmp.eq.s32.totalorder %s25, 0
      %p162 = por %p160, %p161
      %p163 = scmp.le.s32.totalorder 1, %s19
      %p164 = scmp.lt.s32.totalorder %s19, 3
      %p165 = pnand %p163, %p164
      %p166 = pneg %p165
      // Predicated region
      $region9: #{tpu_custom_call.1} parent=5 // pred_check
        _
      $region10: #{tpu_custom_call.1} parent=5 // pred_check_branch
        %168 = sbr.rel (%p165) target = $region12
      $region11: #{tpu_custom_call.1} parent=5 // pred_region
        %s169 = ssub.s32 %s19, 1
        // Predicated region
        $region13: #{tpu_custom_call.1} parent=11 // pred_check
          %p170 = pneg %p66
        $region14: #{tpu_custom_call.1} parent=11 // pred_check_branch
          %172 = sbr.rel (%p170) target = $region16
        $region15: #{tpu_custom_call.1} parent=11 // pred_region
          %s174 = ssub.s32 256, 256
          %175 = vsyncadd [#allocation6], %s174
          %s176 = sshll.u32 [#allocation5], 4
          %s177 = int_to_ptr.vmem [resolvable:$true] %s176
          %182 = dma.hbm_to_vmem [thread:$0]  %s1, 256, %s177, [#allocation6], 64, 64, 4
        $region16: #{tpu_custom_call.1} parent=11 // pred_fallthru
          _
        // Predicated region
        $region17: #{tpu_custom_call.1} parent=11 // pred_check
          %p183 = pneg %p87
        $region18: #{tpu_custom_call.1} parent=11 // pred_check_branch
          %185 = sbr.rel (%p183) target = $region20
        $region19: #{tpu_custom_call.1} parent=11 // pred_region
          %s187 = ssub.s32 1024, 1024
          %188 = vsyncadd [#allocation6], %s187
          %s189 = sshll.u32 [#allocation7], 4
          %s190 = int_to_ptr.vmem [resolvable:$true] %s189
          %195 = dma.hbm_to_vmem [thread:$0]  %s2, 1024, %s190, [#allocation6], 64, 64, 4
        $region20: #{tpu_custom_call.1} parent=11 // pred_fallthru
          _
        // Predicated region
        $region21: #{tpu_custom_call.1} parent=11 // pred_check
          %p196 = pneg %p108
        $region22: #{tpu_custom_call.1} parent=11 // pred_check_branch
          %198 = sbr.rel (%p196) target = $region24
        $region23: #{tpu_custom_call.1} parent=11 // pred_region
          %s200 = ssub.s32 1024, 1024
          %201 = vsyncadd [#allocation9], %s200
          %s202 = sshll.u32 [#allocation8], 4
          %s203 = int_to_ptr.vmem [resolvable:$true] %s202
          %208 = dma.hbm_to_vmem [thread:$0]  %s3, 1024, %s203, [#allocation9], 64, 64, 4
        $region24: #{tpu_custom_call.1} parent=11 // pred_fallthru
          _
        // Predicated region
        $region25: #{tpu_custom_call.1} parent=11 // pred_check
          %p209 = pneg %p129
        $region26: #{tpu_custom_call.1} parent=11 // pred_check_branch
          %211 = sbr.rel (%p209) target = $region28
        $region27: #{tpu_custom_call.1} parent=11 // pred_region
          _
        $region28: #{tpu_custom_call.1} parent=11 // pred_fallthru
          _
      $region12: #{tpu_custom_call.1} parent=5 // pred_fallthru
        _
      %p212 = scmp.lt.s32.totalorder %s19, 2
      // Predicated region
      $region29: #{tpu_custom_call.1} parent=5 // pred_check
        %p213 = pneg %p212
      $region30: #{tpu_custom_call.1} parent=5 // pred_check_branch
        %215 = sbr.rel (%p213) target = $region32
      $region31: #{tpu_custom_call.1} parent=5 // pred_region
        // Predicated region
        $region33: #{tpu_custom_call.1} parent=31 // pred_check
          %p216 = pneg %p39
        $region34: #{tpu_custom_call.1} parent=31 // pred_check_branch
          %218 = sbr.rel (%p216) target = $region36
        $region35: #{tpu_custom_call.1} parent=31 // pred_region
          %s219 = sand.u32 %s29, 1
          %s220 = scalar_lea.sflag [#allocation3], %s219
          %s221 = sand.u32 %s29, 1
          %s222 = smul.addr %s221, 8
          %s223 = scalar_lea.vmem [#allocation2], %s222
          %s225 = ssub.s32 128, 128
          %226 = vsyncadd %s220, %s225
          %s227 = smul.addr %s19, 128
          %s228 = scalar_lea.hbm %s0, %s227
          %s230 = sshll.u32 %s223, 4
          %s231 = int_to_ptr.vmem [resolvable:$true] %s230
          %233 = dma.hbm_to_vmem [thread:$0]  %s228, 128, %s231, %s220
        $region36: #{tpu_custom_call.1} parent=31 // pred_fallthru
          _
      $region32: #{tpu_custom_call.1} parent=5 // pred_fallthru
        _
      %p234 = scmp.le.s32.totalorder 1, %s19
      %p235 = scmp.lt.s32.totalorder %s19, 3
      %p236 = pnand %p234, %p235
      %p237 = pneg %p236
      // Predicated region
      $region37: #{tpu_custom_call.1} parent=5 // pred_check
        _
      $region38: #{tpu_custom_call.1} parent=5 // pred_check_branch
        %239 = sbr.rel (%p236) target = $region40
      $region39: #{tpu_custom_call.1} parent=5 // pred_region
        %s240 = ssub.s32 %s19, 1
        %s241 = sand.u32 %s32, 1
        %s242 = scalar_lea.sflag [#allocation3], %s241
        %s243 = sand.u32 %s32, 1
        %s244 = smul.addr %s243, 8
        %s245 = scalar_lea.vmem [#allocation2], %s244
        // Predicated region
        $region41: #{tpu_custom_call.1} parent=39 // pred_check
          %p246 = pneg %p45
        $region42: #{tpu_custom_call.1} parent=39 // pred_check_branch
          %248 = sbr.rel (%p246) target = $region44
        $region43: #{tpu_custom_call.1} parent=39 // pred_region
          %249 = dma.done %s242, 128
        $region44: #{tpu_custom_call.1} parent=39 // pred_fallthru
          _
        // Predicated region
        $region45: #{tpu_custom_call.1} parent=39 // pred_check
          %p250 = pneg %p66
        $region46: #{tpu_custom_call.1} parent=39 // pred_check_branch
          %252 = sbr.rel (%p250) target = $region48
        $region47: #{tpu_custom_call.1} parent=39 // pred_region
          %253 = dma.done [#allocation6], 256
        $region48: #{tpu_custom_call.1} parent=39 // pred_fallthru
          _
        // Predicated region
        $region49: #{tpu_custom_call.1} parent=39 // pred_check
          %p254 = pneg %p87
        $region50: #{tpu_custom_call.1} parent=39 // pred_check_branch
          %256 = sbr.rel (%p254) target = $region52
        $region51: #{tpu_custom_call.1} parent=39 // pred_region
          %257 = dma.done [#allocation6], 1024
        $region52: #{tpu_custom_call.1} parent=39 // pred_fallthru
          _
        // Predicated region
        $region53: #{tpu_custom_call.1} parent=39 // pred_check
          %p258 = pneg %p108
        $region54: #{tpu_custom_call.1} parent=39 // pred_check_branch
          %260 = sbr.rel (%p258) target = $region56
        $region55: #{tpu_custom_call.1} parent=39 // pred_region
          %261 = dma.done [#allocation9], 1024
        $region56: #{tpu_custom_call.1} parent=39 // pred_fallthru
          _
        %s262 = sand.u32 %s32, 1
        %s263 = scalar_lea.sflag [#allocation3], %s262
        %s264 = sand.u32 %s32, 1
        %s265 = smul.addr %s264, 8
        %s266 = scalar_lea.vmem [#allocation2], %s265
        %p267 = pneg %p45
        %p268 = pneg %p42
        %p269 = pneg %p66
        %p270 = pneg %p63
        %p271 = pneg %p87
        %p272 = pneg %p84
        %p273 = pneg %p108
        %p274 = pneg %p105
        %p275 = pneg %p129
        %p276 = pneg %p126
        %p277 = pneg %p155
        %p278 = pneg %p152
        %s279 = sand.u32 %s142, 1
        %s280 = scalar_lea.sflag [#allocation4], %s279
        %s281 = sand.u32 %s142, 1
        %s282 = smul.addr %s281, 8
        %s283 = scalar_lea.vmem [#allocation10], %s282
        %v285 = vld [vmem:[%s245] sm:$0xff]
        %v286 = vld [vmem:[%s4] sm:$0x1]
        %v287 = vld [vmem:[%s4 + $0x1] sm:$0x1]
        %v288 = vld [vmem:[%s4 + $0x2] sm:$0x1]
        %v289 = vpack.c.bf16 %v285, %v285
        %v290 = vld [vmem:[#allocation5] sm:$0xf]
        %v291 = vld [vmem:[#allocation5 + $0x4] sm:$0xf]
        %v292 = vld [vmem:[#allocation5 + $0x8] sm:$0xf]
        %v293 = vld [vmem:[#allocation5 + $0xc] sm:$0xf]
        %v295 = vlaneseq
        %v296 = vshrl.u32 %v295, 7
        %v297 = vsub.s32 0, %v296
        %v298 = vrot.slane %v286, %v297
        %v304 = vunpack.c.l.b16 %v290
        %v305 = vunpack.c.l.b16 %v291
        %v306 = vunpack.c.l.b16 %v292
        %v307 = vunpack.c.l.b16 %v293
        %v308 = vpack.c.b16 %v305, %v304
        %v309 = vpack.c.b16 %v307, %v306
        %vm312 = vcmask 261120
        %v314 = vsel %vm312, %v289, 0
        %316 = vmatprep.subr.bf16.mxu0 0
        %317 = vmatpush1.bf16.msra.mxu0 %v308
        %318 = vmatprep.subr.bf16.mxu0 0
        %319 = vmatpush1.bf16.msra.mxu0 %v309
        %320 = vmatprep.subr.bf16.mxu0 0
        %321 = vmatpush1.bf16.msra.mxu0 0
        %322 = vmatprep.subr.bf16.mxu0 0
        %323 = vmatpush1.bf16.msra.mxu0 0
        %324 = vmatprep.subr.bf16.mxu0 0
        %325 = vmatpush1.bf16.msra.mxu0 0
        %326 = vmatprep.subr.bf16.mxu0 0
        %327 = vmatpush1.bf16.msra.mxu0 0
        %328 = vmatprep.subr.bf16.mxu0 0
        %329 = vmatpush1.bf16.msra.mxu0 0
        %330 = vmatprep.subr.bf16.mxu0 0
        %331 = vmatpush1.bf16.msra.mxu0 0
        %332 = vmatprep.subr.bf16.mxu0 0
        %333 = vmatpush1.bf16.msra.mxu0 0
        %334 = vmatprep.subr.bf16.mxu0 0
        %335 = vmatpush1.bf16.msra.mxu0 0
        %336 = vmatprep.subr.bf16.mxu0 0
        %337 = vmatpush1.bf16.msra.mxu0 0
        %338 = vmatprep.subr.bf16.mxu0 0
        %339 = vmatpush1.bf16.msra.mxu0 0
        %340 = vmatprep.subr.bf16.mxu0 0
        %341 = vmatpush1.bf16.msra.mxu0 0
        %342 = vmatprep.subr.bf16.mxu0 0
        %343 = vmatpush1.bf16.msra.mxu0 0
        %344 = vmatprep.subr.bf16.mxu0 0
        %345 = vmatpush1.bf16.msra.mxu0 0
        %346 = vmatprep.subr.bf16.mxu0 0
        %347 = vmatpush1.bf16.msra.mxu0 0
        %348 = vmatprep.mubr.bf16.mxu0 0
        %349 = vmatmul.mubr.bf16.gmra.mrb[0].mxu0 %v314
        %v350 = vpop.f32.mrb[0].mxu0
        %v351 = vadd.f32 %v298, %v350
        %v352 = vpop.f32.mrb[0].mxu0
        %v353 = vpop.f32.mrb[0].mxu0
        %v354 = vpop.f32.mrb[0].mxu0
        %355 = vdwg.mxu0
        %v356 = vmax.f32 %v351, 0.0
        %v357 = vpack.c.bf16 %v356, %v356
        %v358 = vld [vmem:[#allocation7] sm:$0xf]
        %v359 = vld [vmem:[#allocation7 + $0x4] sm:$0xf]
        %v360 = vld [vmem:[#allocation7 + $0x8] sm:$0xf]
        %v361 = vld [vmem:[#allocation7 + $0xc] sm:$0xf]
        %v362 = vld [vmem:[#allocation7 + $0x10] sm:$0xf]
        %v363 = vld [vmem:[#allocation7 + $0x14] sm:$0xf]
        %v364 = vld [vmem:[#allocation7 + $0x18] sm:$0xf]
        %v365 = vld [vmem:[#allocation7 + $0x1c] sm:$0xf]
        %v366 = vld [vmem:[#allocation7 + $0x20] sm:$0xf]
        %v367 = vld [vmem:[#allocation7 + $0x24] sm:$0xf]
        %v368 = vld [vmem:[#allocation7 + $0x28] sm:$0xf]
        %v369 = vld [vmem:[#allocation7 + $0x2c] sm:$0xf]
        %v370 = vld [vmem:[#allocation7 + $0x30] sm:$0xf]
        %v371 = vld [vmem:[#allocation7 + $0x34] sm:$0xf]
        %v372 = vld [vmem:[#allocation7 + $0x38] sm:$0xf]
        %v373 = vld [vmem:[#allocation7 + $0x3c] sm:$0xf]
        %v375 = vlaneseq
        %v376 = vshrl.u32 %v375, 7
        %v377 = vsub.s32 0, %v376
        %v378 = vrot.slane %v287, %v377
        %v396 = vunpack.c.l.b16 %v358
        %v397 = vunpack.c.l.b16 %v359
        %v398 = vunpack.c.l.b16 %v360
        %v399 = vunpack.c.l.b16 %v361
        %v400 = vunpack.c.l.b16 %v362
        %v401 = vunpack.c.l.b16 %v363
        %v402 = vunpack.c.l.b16 %v364
        %v403 = vunpack.c.l.b16 %v365
        %v404 = vunpack.c.l.b16 %v366
        %v405 = vunpack.c.l.b16 %v367
        %v406 = vunpack.c.l.b16 %v368
        %v407 = vunpack.c.l.b16 %v369
        %v408 = vunpack.c.l.b16 %v370
        %v409 = vunpack.c.l.b16 %v371
        %v410 = vunpack.c.l.b16 %v372
        %v411 = vunpack.c.l.b16 %v373
        %v412 = vpack.c.b16 %v397, %v396
        %v413 = vpack.c.b16 %v399, %v398
        %v414 = vpack.c.b16 %v401, %v400
        %v415 = vpack.c.b16 %v403, %v402
        %v416 = vpack.c.b16 %v405, %v404
        %v417 = vpack.c.b16 %v407, %v406
        %v418 = vpack.c.b16 %v409, %v408
        %v419 = vpack.c.b16 %v411, %v410
        %428 = vmatprep.subr.bf16.mxu0 0
        %429 = vmatpush1.bf16.msra.mxu0 %v412
        %430 = vmatprep.subr.bf16.mxu0 0
        %431 = vmatpush1.bf16.msra.mxu0 %v413
        %432 = vmatprep.subr.bf16.mxu0 0
        %433 = vmatpush1.bf16.msra.mxu0 %v414
        %434 = vmatprep.subr.bf16.mxu0 0
        %435 = vmatpush1.bf16.msra.mxu0 %v415
        %436 = vmatprep.subr.bf16.mxu0 0
        %437 = vmatpush1.bf16.msra.mxu0 %v416
        %438 = vmatprep.subr.bf16.mxu0 0
        %439 = vmatpush1.bf16.msra.mxu0 %v417
        %440 = vmatprep.subr.bf16.mxu0 0
        %441 = vmatpush1.bf16.msra.mxu0 %v418
        %442 = vmatprep.subr.bf16.mxu0 0
        %443 = vmatpush1.bf16.msra.mxu0 %v419
        %444 = vmatprep.subr.bf16.mxu0 0
        %445 = vmatpush1.bf16.msra.mxu0 0
        %446 = vmatprep.subr.bf16.mxu0 0
        %447 = vmatpush1.bf16.msra.mxu0 0
        %448 = vmatprep.subr.bf16.mxu0 0
        %449 = vmatpush1.bf16.msra.mxu0 0
        %450 = vmatprep.subr.bf16.mxu0 0
        %451 = vmatpush1.bf16.msra.mxu0 0
        %452 = vmatprep.subr.bf16.mxu0 0
        %453 = vmatpush1.bf16.msra.mxu0 0
        %454 = vmatprep.subr.bf16.mxu0 0
        %455 = vmatpush1.bf16.msra.mxu0 0
        %456 = vmatprep.subr.bf16.mxu0 0
        %457 = vmatpush1.bf16.msra.mxu0 0
        %458 = vmatprep.subr.bf16.mxu0 0
        %459 = vmatpush1.bf16.msra.mxu0 0
        %460 = vmatprep.mubr.bf16.mxu0 0
        %461 = vmatmul.mubr.bf16.gmra.mrb[0].mxu0 %v357
        %v462 = vpop.f32.mrb[0].mxu0
        %v463 = vadd.f32 %v378, %v462
        %v464 = vpop.f32.mrb[0].mxu0
        %v465 = vpop.f32.mrb[0].mxu0
        %v466 = vpop.f32.mrb[0].mxu0
        %467 = vdwg.mxu0
        %v468 = vmax.f32 %v463, 0.0
        %v469 = vpack.c.bf16 %v468, %v468
        %v470 = vld [vmem:[#allocation8] sm:$0xf]
        %v471 = vld [vmem:[#allocation8 + $0x4] sm:$0xf]
        %v472 = vld [vmem:[#allocation8 + $0x8] sm:$0xf]
        %v473 = vld [vmem:[#allocation8 + $0xc] sm:$0xf]
        %v474 = vld [vmem:[#allocation8 + $0x10] sm:$0xf]
        %v475 = vld [vmem:[#allocation8 + $0x14] sm:$0xf]
        %v476 = vld [vmem:[#allocation8 + $0x18] sm:$0xf]
        %v477 = vld [vmem:[#allocation8 + $0x1c] sm:$0xf]
        %v478 = vld [vmem:[#allocation8 + $0x20] sm:$0xf]
        %v479 = vld [vmem:[#allocation8 + $0x24] sm:$0xf]
        %v480 = vld [vmem:[#allocation8 + $0x28] sm:$0xf]
        %v481 = vld [vmem:[#allocation8 + $0x2c] sm:$0xf]
        %v482 = vld [vmem:[#allocation8 + $0x30] sm:$0xf]
        %v483 = vld [vmem:[#allocation8 + $0x34] sm:$0xf]
        %v484 = vld [vmem:[#allocation8 + $0x38] sm:$0xf]
        %v485 = vld [vmem:[#allocation8 + $0x3c] sm:$0xf]
        %v487 = vlaneseq
        %v488 = vshrl.u32 %v487, 7
        %v489 = vsub.s32 0, %v488
        %v490 = vrot.slane %v288, %v489
        %v508 = vunpack.c.l.b16 %v470
        %v509 = vunpack.c.l.b16 %v471
        %v510 = vunpack.c.l.b16 %v472
        %v511 = vunpack.c.l.b16 %v473
        %v512 = vunpack.c.l.b16 %v474
        %v513 = vunpack.c.l.b16 %v475
        %v514 = vunpack.c.l.b16 %v476
        %v515 = vunpack.c.l.b16 %v477
        %v516 = vunpack.c.l.b16 %v478
        %v517 = vunpack.c.l.b16 %v479
        %v518 = vunpack.c.l.b16 %v480
        %v519 = vunpack.c.l.b16 %v481
        %v520 = vunpack.c.l.b16 %v482
        %v521 = vunpack.c.l.b16 %v483
        %v522 = vunpack.c.l.b16 %v484
        %v523 = vunpack.c.l.b16 %v485
        %v524 = vpack.c.b16 %v509, %v508
        %v525 = vpack.c.b16 %v511, %v510
        %v526 = vpack.c.b16 %v513, %v512
        %v527 = vpack.c.b16 %v515, %v514
        %v528 = vpack.c.b16 %v517, %v516
        %v529 = vpack.c.b16 %v519, %v518
        %v530 = vpack.c.b16 %v521, %v520
        %v531 = vpack.c.b16 %v523, %v522
        %540 = vmatprep.subr.bf16.mxu0 0
        %541 = vmatpush1.bf16.msra.mxu0 %v524
        %542 = vmatprep.subr.bf16.mxu0 0
        %543 = vmatpush1.bf16.msra.mxu0 %v525
        %544 = vmatprep.subr.bf16.mxu0 0
        %545 = vmatpush1.bf16.msra.mxu0 %v526
        %546 = vmatprep.subr.bf16.mxu0 0
        %547 = vmatpush1.bf16.msra.mxu0 %v527
        %548 = vmatprep.subr.bf16.mxu0 0
        %549 = vmatpush1.bf16.msra.mxu0 %v528
        %550 = vmatprep.subr.bf16.mxu0 0
        %551 = vmatpush1.bf16.msra.mxu0 %v529
        %552 = vmatprep.subr.bf16.mxu0 0
        %553 = vmatpush1.bf16.msra.mxu0 %v530
        %554 = vmatprep.subr.bf16.mxu0 0
        %555 = vmatpush1.bf16.msra.mxu0 %v531
        %556 = vmatprep.subr.bf16.mxu0 0
        %557 = vmatpush1.bf16.msra.mxu0 0
        %558 = vmatprep.subr.bf16.mxu0 0
        %559 = vmatpush1.bf16.msra.mxu0 0
        %560 = vmatprep.subr.bf16.mxu0 0
        %561 = vmatpush1.bf16.msra.mxu0 0
        %562 = vmatprep.subr.bf16.mxu0 0
        %563 = vmatpush1.bf16.msra.mxu0 0
        %564 = vmatprep.subr.bf16.mxu0 0
        %565 = vmatpush1.bf16.msra.mxu0 0
        %566 = vmatprep.subr.bf16.mxu0 0
        %567 = vmatpush1.bf16.msra.mxu0 0
        %568 = vmatprep.subr.bf16.mxu0 0
        %569 = vmatpush1.bf16.msra.mxu0 0
        %570 = vmatprep.subr.bf16.mxu0 0
        %571 = vmatpush1.bf16.msra.mxu0 0
        %572 = vmatprep.mubr.bf16.mxu0 0
        %573 = vmatmul.mubr.bf16.gmra.mrb[0].mxu0 %v469
        %v574 = vpop.f32.mrb[0].mxu0
        %v575 = vadd.f32 %v490, %v574
        %v576 = vpop.f32.mrb[0].mxu0
        %v577 = vpop.f32.mrb[0].mxu0
        %v578 = vpop.f32.mrb[0].mxu0
        %579 = vdwg.mxu0
        %580 = vst [vmem:[%s283] sm:$0xff] %v575
        %s581 = sand.u32 %s142, 1
        %s582 = scalar_lea.sflag [#allocation4], %s581
        %s583 = sand.u32 %s142, 1
        %s584 = smul.addr %s583, 8
        %s585 = scalar_lea.vmem [#allocation10], %s584
        // Predicated region
        $region57: #{tpu_custom_call.1} parent=39 // pred_check
          %p586 = pneg %p152
        $region58: #{tpu_custom_call.1} parent=39 // pred_check_branch
          %588 = sbr.rel (%p586) target = $region60
        $region59: #{tpu_custom_call.1} parent=39 // pred_region
          %s590 = ssub.s32 128, 128
          %591 = vsyncadd %s582, %s590
          %s592 = smul.addr %s24, 128
          %s593 = scalar_lea.hbm %s5, %s592
          %s595 = sshll.u32 %s585, 4
          %s596 = int_to_ptr.vmem [resolvable:$true] %s595
          %598 = dma.vmem_to_hbm [thread:$0]  %s596, 128, %s593, %s582
        $region60: #{tpu_custom_call.1} parent=39 // pred_fallthru
          _
      $region40: #{tpu_custom_call.1} parent=5 // pred_fallthru
        _
      %p599 = scmp.le.s32.totalorder 2, %s19
      // Predicated region
      $region61: #{tpu_custom_call.1} parent=5 // pred_check
        %p600 = pneg %p599
      $region62: #{tpu_custom_call.1} parent=5 // pred_check_branch
        %602 = sbr.rel (%p600) target = $region64
      $region63: #{tpu_custom_call.1} parent=5 // pred_region
        %s603 = ssub.s32 %s19, 2
        // Predicated region
        $region65: #{tpu_custom_call.1} parent=63 // pred_check
          %p604 = pneg %p158
        $region66: #{tpu_custom_call.1} parent=63 // pred_check_branch
          %606 = sbr.rel (%p604) target = $region68
        $region67: #{tpu_custom_call.1} parent=63 // pred_region
          %s607 = sand.u32 %s143, 1
          %s608 = scalar_lea.sflag [#allocation4], %s607
          %s609 = sand.u32 %s143, 1
          %s610 = smul.addr %s609, 8
          %s611 = scalar_lea.vmem [#allocation10], %s610
          %612 = dma.done %s608, 128
        $region68: #{tpu_custom_call.1} parent=63 // pred_fallthru
          _
      $region64: #{tpu_custom_call.1} parent=5 // pred_fallthru
        _
    $region6: #{tpu_custom_call.1} parent=1 // loop_footer
      %s23 = sadd.s32 1, %s19
    $region7: #{tpu_custom_call.1} parent=1 // loop_footer_branch
      %18 = sbr.rel target = $region3
    $region8: #{tpu_custom_call.1} parent=1 // loop_exit
      _
    %613 = vsyncpa [#allocation3], 1
    %s614 = scalar_lea.sflag [#allocation3], 1
    %615 = vsyncpa %s614, 1
    %616 = vsyncpa [#allocation6], 1
    %617 = vsyncpa [#allocation9], 1
    %618 = vsyncpa [#allocation4], 1
    %s619 = scalar_lea.sflag [#allocation4], 1
    %620 = vsyncpa %s619, 1

</llo_original>
